<compile_context>
chip_gen: v5e
topology: v5e:2x2
jax: 0.10.0
libtpu: 0.0.40
codegen_flags: <defaults>
</compile_context>

<pallas_src>
import functools
import math

import jax
import jax.numpy as jnp
import numpy as np
from jax import lax
from jax.experimental import pallas as pl
from jax.experimental.pallas import tpu as pltpu

_LANE = 128
_SUBLANE = 8

# Tables up to this many bytes are kept VMEM-resident (Pallas may double-buffer
# the block, so worst case 2x this) instead of row-gathered from HBM.
_VMEM_TABLE_MAX_BYTES = 2 * 1024 * 1024

# Budget for the double-buffered landing slots + the pipelined output tiles.
# Small enough that (budget + 2x resident table) stays under every
# generation's scoped-VMEM default with headroom; raise tm together with
# pltpu.CompilerParams(vmem_limit_bytes=...) on v6e if bigger tiles are wanted.
_VMEM_TILE_BUDGET_BYTES = 8 * 1024 * 1024


def _round_up(x, m):
    return (x + m - 1) // m * m


def _gather_kernel(ids_ref, lut_ref, out_ref, buf, sem, *, tm, scale):
    """Double-buffered row gather: one grid step = one (tm, D_pad) token tile.

    ids_ref : (N_pad,) int32 SMEM   -- scalar-prefetched token ids (flattened)
    lut_ref : (V, D_pad) ref        -- embedding table; either a VMEM-resident
                                       block (small vocab) or an HBM ref
                                       (memory_space=pl.ANY, large vocab)
    out_ref : (tm, D_pad) VMEM      -- output tile for this token block
    buf     : (2, tm, D_pad) VMEM   -- double-buffered gather landing slots
    sem     : (2,) DMA semaphores   -- one per landing slot
    """
    t = pl.program_id(0)
    n_tiles = pl.num_programs(0)
    slot = t & 1

    def issue(tile, s):
        base = tile * tm

        @pl.loop(0, tm)
        def _(j):
            row = ids_ref[base + j]
            pltpu.make_async_copy(lut_ref.at[row], buf.at[s, j], sem.at[s]).start()

    # Prime slot 0 with this (first) tile's rows.
    # TODO(synk): a "parallel" token axis (megacore) would need this priming on
    # each core's first *local* step; the axis is kept "arbitrary" so the
    # cross-step DMA carry below is safe on all generations (incl. v7x 2-TC).
    @pl.when(t == 0)
    def _():
        issue(0, 0)

    # Prefetch the next tile's rows into the other slot before draining ours,
    # so their fetch latency overlaps this tile's wait + scale + writeback.
    @pl.when(t + 1 < n_tiles)
    def _():
        issue(t + 1, (t + 1) & 1)

    # Single wait per slot: the tm equal-sized row copies exactly tile the
    # (tm, D_pad) slot, so one descriptor spanning the whole slot drains them
    # all (DMA semaphores count bytes) -- no per-row .wait() sync points.
    pltpu.make_async_copy(buf.at[slot], buf.at[slot], sem.at[slot]).wait()

    # Fused sqrt(d_model) scaling on the lane-dense writeback.  (The landing
    # buffer itself is kept: DMA-ing rows directly into out_ref would conflict
    # with the cross-step double buffering above, which is the bigger win.)
    out_ref[...] = (buf[slot] * jnp.float32(scale)).astype(out_ref.dtype)


def embeddings_forward(ids, lut, *, tm=256, vmem_table_max_bytes=_VMEM_TABLE_MAX_BYTES):
    """Pallas equivalent of Embeddings.forward: lut[ids] * sqrt(d_model).

    ids : (...,) integer token indices (any leading shape, e.g. (B, S)).
    lut : (vocab, d_model) embedding table.
    Returns ids.shape + (d_model,), dtype == lut.dtype.
    """
    orig_shape = ids.shape
    N = max(1, int(np.prod(orig_shape)))
    V, D = lut.shape
    scale = math.sqrt(D)                       # scale by the *true* d_model
    itemsize = jnp.dtype(lut.dtype).itemsize

    # Lane-dense output tiles: pad d_model to a multiple of 128 only if needed.
    # TODO(synk): store the table pre-padded at init (and mask the tail store)
    # so this per-call O(V*D) pad and the out[:, :D] slice never run.
    D_pad = _round_up(D, _LANE)
    if D_pad != D:
        lut = jnp.pad(lut, ((0, 0), (0, D_pad - D)))

    ids_flat = ids.reshape(-1).astype(jnp.int32)
    # TODO(synk): for very large B*S, stream (tm,)-sized id chunks into SMEM
    # per grid step instead of scalar-prefetching all ids (1-D SMEM pads to the
    # next power-of-two bytes).

    # Token-tile size: multiple of 8 sublanes, sized against the VMEM budget
    # (2 landing slots + 2 pipelined output buffers per token).
    bytes_per_tok = D_pad * itemsize * 4
    tm_budget = max(_SUBLANE, _VMEM_TILE_BUDGET_BYTES // bytes_per_tok)
    tm = min(tm, tm_budget, _round_up(N, _SUBLANE))
    tm = max(_SUBLANE, (tm // _SUBLANE) * _SUBLANE)

    N_pad = _round_up(N, tm)
    if N_pad != N:                             # pad with id 0 (valid row); sliced off below
        ids_flat = jnp.pad(ids_flat, (0, N_pad - N))
    n_tiles = N_pad // tm

    # Small tables: constant-index BlockSpec => DMA'd to VMEM once, resident
    # across the grid; rows are then gathered with local VMEM->VMEM copies.
    # Large tables: left in HBM, rows gathered straight from HBM.
    resident = V * D_pad * itemsize <= vmem_table_max_bytes
    if resident:
        lut_spec = pl.BlockSpec((V, D_pad), lambda t, ids: (0, 0))
    else:
        lut_spec = pl.BlockSpec(memory_space=pl.ANY)

    kernel = functools.partial(_gather_kernel, tm=tm, scale=scale)
    out = pl.pallas_call(
        kernel,
        out_shape=jax.ShapeDtypeStruct((N_pad, D_pad), lut.dtype),
        grid_spec=pltpu.PrefetchScalarGridSpec(
            num_scalar_prefetch=1,             # ids land in SMEM before the grid runs
            grid=(n_tiles,),
            in_specs=[lut_spec],
            out_specs=pl.BlockSpec((tm, D_pad), lambda t, ids: (t, 0)),
            scratch_shapes=[
                pltpu.VMEM((2, tm, D_pad), lut.dtype),   # double-buffered landing slots
                pltpu.SemaphoreType.DMA((2,)),           # one DMA sem per slot
            ],
        ),
        compiler_params=pltpu.CompilerParams(
            # "arbitrary": the double buffer carries in-flight DMAs across grid
            # steps (see the priming note in the kernel body).
            dimension_semantics=("arbitrary",),
        ),
    )(ids_flat, lut)

    if N_pad != N or D_pad != D:
        out = out[:N, :D]
    return out.reshape(*orig_shape, D)


if __name__ == "__main__":
    # Small, deterministic setup consistent with the module:
    #   vocab=256, d_model=128, batch=2, seq=8
    key = jax.random.PRNGKey(0)
    k_lut, k_ids = jax.random.split(key)

    vocab, d_model = 256, 128
    B, S = 2, 8

    # Deterministic synthetic "nn.Embedding" weight.
    lut = jax.random.normal(k_lut, (vocab, d_model), dtype=jnp.float32) * 0.02
    ids = jax.random.randint(k_ids, (B, S), minval=0, maxval=vocab, dtype=jnp.int32)

    # Pure-JAX reference: lut[x] * sqrt(d_model)
    ref = lut[ids] * jnp.float32(math.sqrt(d_model))

    # Small-table path (table VMEM-resident).  tm=8 forces a multi-step grid so
    # the cross-step double buffering / slot alternation is actually exercised.
    out = embeddings_forward(ids, lut, tm=8)
    out = jax.block_until_ready(out)
    np.testing.assert_allclose(np.asarray(out), np.asarray(ref), rtol=1e-6, atol=1e-6)

    # Large-table path (table left in HBM, rows gathered by DMA), forced by
    # zeroing the residency threshold.
    out_hbm = embeddings_forward(ids, lut, tm=8, vmem_table_max_bytes=0)
    out_hbm = jax.block_until_ready(out_hbm)
    np.testing.assert_allclose(np.asarray(out_hbm), np.asarray(ref), rtol=1e-6, atol=1e-6)

    print("KERNEL_OK")
</pallas_src>

<mosaic_0001>
module attributes {stable_mosaic.version = 11 : i64} {
  func.func @_gather_kernel(%arg0: i32, %arg1: memref<16xi32, #tpu.memory_space<smem>>, %arg2: memref<256x128xf32, #tpu.memory_space<vmem>>, %arg3: memref<8x128xf32, #tpu.memory_space<vmem>>, %arg4: memref<2x8x128xf32, #tpu.memory_space<vmem>>, %arg5: memref<2x!tpu.dma_semaphore, #tpu.memory_space<semaphore_mem>>) attributes {dimension_semantics = [#tpu.dimension_semantics<arbitrary>], iteration_bounds = array<i64: 2>, scalar_prefetch = 1 : i64, scratch_operands = 2 : i64, tpu.core_type = #tpu.core_type<tc>, window_params = [{pipeline_mode = #tpu.pipeline_mode<synchronous>, transform_indices = @transform_0, window_bounds = array<i64: 256, 128>}, {transform_indices = @transform_1, window_bounds = array<i64: 8, 128>}]} {
    %c1_i32 = arith.constant 1 : i32
    %0 = arith.andi %arg0, %c1_i32 : i32
    %c0_i32 = arith.constant 0 : i32
    %1 = arith.cmpi eq, %arg0, %c0_i32 : i32
    %2 = arith.extui %1 : i1 to i32
    %c0_i32_0 = arith.constant 0 : i32
    %3 = arith.cmpi ne, %2, %c0_i32_0 : i32
    scf.if %3 {
      %c0_i32_10 = arith.constant 0 : i32
      %c8_i32 = arith.constant 8 : i32
      %20 = arith.addi %c0_i32_10, %c8_i32 : i32
      %c1_i32_11 = arith.constant 1 : i32
      scf.for %arg6 = %c0_i32_10 to %20 step %c1_i32_11  : i32 {
        %c1_i32_13 = arith.constant 1 : i32
        %21 = arith.muli %arg6, %c1_i32_13 : i32
        %c0_i32_14 = arith.constant 0 : i32
        %22 = arith.addi %c0_i32_14, %21 : i32
        %c0_i32_15 = arith.constant 0 : i32
        %23 = arith.addi %c0_i32_15, %22 : i32
        %24 = arith.index_cast %23 : i32 to index
        %25 = memref.load %arg1[%24] : memref<16xi32, #tpu.memory_space<smem>>
        %c0_i32_16 = arith.constant 0 : i32
        %c0_i32_17 = arith.constant 0 : i32
        %c0_i32_18 = arith.constant 0 : i32
        %26 = tpu.memref_slice %arg2[%25, %c0_i32_18] : memref<256x128xf32, #tpu.memory_space<vmem>> -> memref<1x128xf32, #tpu.memory_space<vmem>>
        %27 = tpu.memref_squeeze %26 : memref<1x128xf32, #tpu.memory_space<vmem>> -> memref<128xf32, #tpu.memory_space<vmem>>
        %c0_i32_19 = arith.constant 0 : i32
        %28 = tpu.memref_slice %arg4[%c0_i32_16, %22, %c0_i32_19] : memref<2x8x128xf32, #tpu.memory_space<vmem>> -> memref<1x1x128xf32, #tpu.memory_space<vmem>>
        %29 = tpu.memref_squeeze %28 : memref<1x1x128xf32, #tpu.memory_space<vmem>> -> memref<128xf32, #tpu.memory_space<vmem>>
        %30 = tpu.memref_slice %arg5[%c0_i32_17] : memref<2x!tpu.dma_semaphore, #tpu.memory_space<semaphore_mem>> -> memref<1x!tpu.dma_semaphore, #tpu.memory_space<semaphore_mem>>
        %31 = tpu.memref_squeeze %30 : memref<1x!tpu.dma_semaphore, #tpu.memory_space<semaphore_mem>> -> memref<!tpu.dma_semaphore, #tpu.memory_space<semaphore_mem>>
        tpu.enqueue_dma source(%27 : memref<128xf32, #tpu.memory_space<vmem>>) target(%29 : memref<128xf32, #tpu.memory_space<vmem>>) target_semaphore(%31 : memref<!tpu.dma_semaphore, #tpu.memory_space<semaphore_mem>>)
      }
      %c8_i32_12 = arith.constant 8 : i32
    } else {
    }
    %c1_i32_1 = arith.constant 1 : i32
    %4 = arith.addi %arg0, %c1_i32_1 : i32
    %c2_i32 = arith.constant 2 : i32
    %5 = arith.cmpi slt, %4, %c2_i32 : i32
    %6 = arith.extui %5 : i1 to i32
    %c0_i32_2 = arith.constant 0 : i32
    %7 = arith.cmpi ne, %6, %c0_i32_2 : i32
    scf.if %7 {
      %c1_i32_10 = arith.constant 1 : i32
      %20 = arith.addi %arg0, %c1_i32_10 : i32
      %c1_i32_11 = arith.constant 1 : i32
      %21 = arith.addi %arg0, %c1_i32_11 : i32
      %c1_i32_12 = arith.constant 1 : i32
      %22 = arith.andi %21, %c1_i32_12 : i32
      %c8_i32 = arith.constant 8 : i32
      %23 = arith.muli %20, %c8_i32 : i32
      %c0_i32_13 = arith.constant 0 : i32
      %c8_i32_14 = arith.constant 8 : i32
      %24 = arith.addi %c0_i32_13, %c8_i32_14 : i32
      %c1_i32_15 = arith.constant 1 : i32
      scf.for %arg6 = %c0_i32_13 to %24 step %c1_i32_15  : i32 {
        %c1_i32_17 = arith.constant 1 : i32
        %25 = arith.muli %arg6, %c1_i32_17 : i32
        %c0_i32_18 = arith.constant 0 : i32
        %26 = arith.addi %c0_i32_18, %25 : i32
        %27 = arith.addi %23, %26 : i32
        %28 = arith.index_cast %27 : i32 to index
        %29 = memref.load %arg1[%28] : memref<16xi32, #tpu.memory_space<smem>>
        %c0_i32_19 = arith.constant 0 : i32
        %30 = tpu.memref_slice %arg2[%29, %c0_i32_19] : memref<256x128xf32, #tpu.memory_space<vmem>> -> memref<1x128xf32, #tpu.memory_space<vmem>>
        %31 = tpu.memref_squeeze %30 : memref<1x128xf32, #tpu.memory_space<vmem>> -> memref<128xf32, #tpu.memory_space<vmem>>
        %c0_i32_20 = arith.constant 0 : i32
        %32 = tpu.memref_slice %arg4[%22, %26, %c0_i32_20] : memref<2x8x128xf32, #tpu.memory_space<vmem>> -> memref<1x1x128xf32, #tpu.memory_space<vmem>>
        %33 = tpu.memref_squeeze %32 : memref<1x1x128xf32, #tpu.memory_space<vmem>> -> memref<128xf32, #tpu.memory_space<vmem>>
        %34 = tpu.memref_slice %arg5[%22] : memref<2x!tpu.dma_semaphore, #tpu.memory_space<semaphore_mem>> -> memref<1x!tpu.dma_semaphore, #tpu.memory_space<semaphore_mem>>
        %35 = tpu.memref_squeeze %34 : memref<1x!tpu.dma_semaphore, #tpu.memory_space<semaphore_mem>> -> memref<!tpu.dma_semaphore, #tpu.memory_space<semaphore_mem>>
        tpu.enqueue_dma source(%31 : memref<128xf32, #tpu.memory_space<vmem>>) target(%33 : memref<128xf32, #tpu.memory_space<vmem>>) target_semaphore(%35 : memref<!tpu.dma_semaphore, #tpu.memory_space<semaphore_mem>>)
      }
      %c8_i32_16 = arith.constant 8 : i32
    } else {
    }
    %c0_i32_3 = arith.constant 0 : i32
    %c0_i32_4 = arith.constant 0 : i32
    %8 = tpu.memref_slice %arg4[%0, %c0_i32_3, %c0_i32_4] : memref<2x8x128xf32, #tpu.memory_space<vmem>> -> memref<1x8x128xf32, #tpu.memory_space<vmem>>
    %9 = tpu.memref_squeeze %8 : memref<1x8x128xf32, #tpu.memory_space<vmem>> -> memref<8x128xf32, #tpu.memory_space<vmem>>
    %c0_i32_5 = arith.constant 0 : i32
    %c0_i32_6 = arith.constant 0 : i32
    %10 = tpu.memref_slice %arg4[%0, %c0_i32_5, %c0_i32_6] : memref<2x8x128xf32, #tpu.memory_space<vmem>> -> memref<1x8x128xf32, #tpu.memory_space<vmem>>
    %11 = tpu.memref_squeeze %10 : memref<1x8x128xf32, #tpu.memory_space<vmem>> -> memref<8x128xf32, #tpu.memory_space<vmem>>
    %12 = tpu.memref_slice %arg5[%0] : memref<2x!tpu.dma_semaphore, #tpu.memory_space<semaphore_mem>> -> memref<1x!tpu.dma_semaphore, #tpu.memory_space<semaphore_mem>>
    %13 = tpu.memref_squeeze %12 : memref<1x!tpu.dma_semaphore, #tpu.memory_space<semaphore_mem>> -> memref<!tpu.dma_semaphore, #tpu.memory_space<semaphore_mem>>
    tpu.wait_dma2 semaphore(%13 : memref<!tpu.dma_semaphore, #tpu.memory_space<semaphore_mem>>) src(%9 : memref<8x128xf32, #tpu.memory_space<vmem>>) dst(%11 : memref<8x128xf32, #tpu.memory_space<vmem>>)
    %14 = arith.index_cast %0 : i32 to index
    %c0 = arith.constant 0 : index
    %c0_7 = arith.constant 0 : index
    %15 = vector.load %arg4[%14, %c0, %c0_7] : memref<2x8x128xf32, #tpu.memory_space<vmem>>, vector<1x8x128xf32>
    %16 = vector.shape_cast %15 : vector<1x8x128xf32> to vector<8x128xf32>
    %cst = arith.constant 11.3137083 : f32
    %17 = vector.broadcast %cst : f32 to vector<8x128xf32>
    %18 = arith.mulf %16, %17 : vector<8x128xf32>
    %c0_8 = arith.constant 0 : index
    %c0_9 = arith.constant 0 : index
    %19 = vector.load %arg3[%c0_8, %c0_9] : memref<8x128xf32, #tpu.memory_space<vmem>>, vector<8x128xf32>
    tpu.vector_store %arg3[%c0_8, %c0_9], %18 {strides = array<i32>} : memref<8x128xf32, #tpu.memory_space<vmem>>, vector<8x128xf32>,
    return
  }
  func.func @transform_0(%arg0: i32, %arg1: memref<16xi32, #tpu.memory_space<smem>>) -> (i32, i32) {
    %c0_i32 = arith.constant 0 : i32
    %c0_i32_0 = arith.constant 0 : i32
    %c0_i32_1 = arith.constant 0 : i32
    return %c0_i32, %c0_i32_0 : i32, i32
  }
  func.func @transform_1(%arg0: i32, %arg1: memref<16xi32, #tpu.memory_space<smem>>) -> (i32, i32) {
    %c0_i32 = arith.constant 0 : i32
    %c0_i32_0 = arith.constant 0 : i32
    return %arg0, %c0_i32 : i32, i32
  }
}

</mosaic_0001>

<llo_original>
// kernel: tpu_custom_call.1
$region0: #{tpu_custom_call.1}
  #allocation0 [shape = 'u32[]', space=smem, size = 0x4, offset = 0x4, fixed_abs, tag = 'smem constant byte address 0x4 - core index']
  #allocation1 [shape = 'u32[72,128]{1,0:T(1,128)}', space=vmem, size = 0x9000, scoped, tag = 'internal scratch']
  #allocation2 [shape = 'f32[2,8,128]{2,1,0:T(8,128)}', space=vmem, size = 0x2000, scoped, tag = 'scratch operand']
  #allocation3 [shape = 's32[2]{0}', space=sflag, size = 0x8, scoped, tag = 'scratch operand']
  #allocation4 [shape = 's32[1]{0}', space=sflag, size = 0x4, scoped, tag = 'scoped memory for tpu_custom_call.1']
  #allocation5 [shape = 'u8[512]{0}', space=smem, size = 0x200, scoped, tag = 'prefetched SMEM operand 0']
  #allocation10 [shape = 's32[]', space=sflag, size = 0x4, offset = 0, fixed_abs, tag = 'sflag constant byte address 0x0 - dummy sync flag']
  #allocation11 [shape = 's32[]', space=sflag, size = 0x4, offset = 0, fixed_abs, tag = 'sflag constant byte address 0x0 - dummy sync flag']
  %s0 = inlined_call_operand.hbm [shape: s32[16], index: 0, kind: input, shape index: {}]
  %s1 = inlined_call_operand.hbm [shape: f32[256,128], index: 1, kind: input, shape index: {}]
  %s2 = inlined_call_operand.hbm [shape: f32[16,128], index: 2, kind: output, shape index: {}]
  %s3 = sld [smem:[#allocation0]]
  $region123: #{tpu_custom_call.1} parent=0
    _
  %s5 = ssub.s32 1, %s3
  %s6 = scalar_select 0, %s5, %s3
  %s8 = sshll.u32 %s0, 4
  %s9 = int_to_ptr.hbm [resolvable:$true] %s8
  %11 = dma.hbm_to_smem %s9, 16, [#allocation5], [#allocation4]
  %13 = dma.done [#allocation4], 16
  %14 = sfence
  $region1: #{tpu_custom_call.1} parent=0
    #allocation6 [shape = 'u8[131072]{0}', space=vmem, size = 0x20000, scoped, tag = 'input window, operand 1, single buffered']
    #allocation7 [shape = 's32[2]{0}', space=sflag, size = 0x8, scoped, tag = 'scoped memory for tpu_custom_call.1']
    #allocation8 [shape = 's32[2]{0}', space=sflag, size = 0x8, scoped, tag = 'scoped memory for tpu_custom_call.1']
    #allocation9 [shape = 'u8[8192]{0}', space=vmem, size = 0x2000, scoped, tag = 'output window, operand 0']
    %15 = vsyncpa [#allocation7], 0
    %16 = vsyncpa [#allocation8], 0
    %s17 = scalar_lea.sflag [#allocation8], 1
    %18 = vsyncpa %s17, 0
    loop: start=0, step=1, limit=4
    $region2: #{tpu_custom_call.1} parent=1 // loop_pre_header
      _
    $region3: #{tpu_custom_call.1} parent=1 // loop_header
      %s20 = sphi 0, %s24
      %p21 = scmp.ge.s32.totalorder %s20, 4
      %s28 = sphi 0, %s28
      %s30 = sphi 0, %s28
      %s31 = sphi 0, %s30
      %s45 = sphi 0, %s31
      %s51 = sphi 0, %s53
      %s54 = sphi 0, %s51
      %s55 = sphi 0, %s54
      %s71 = sphi 0, %s55
    $region4: #{tpu_custom_call.1} parent=1 // loop_header_branch
      %23 = sbr.rel (%p21) target = $region8
    $region5: #{tpu_custom_call.1} parent=1 // loop_body
      %s25 = ssub.s32 %s20, 1
      %s26 = ssub.s32 %s20, 2
      %s27 = sadd.s32 %s20, 1
      %s29 = sadd.s32 %s28, 1
      %p32 = scmp.eq.s32.totalorder %s20, 1
      %p33 = scmp.ne.s32.totalorder %s28, %s30
      %p34 = scmp.eq.s32.totalorder %s20, 0
      %p35 = por %p33, %p34
      %p36 = scmp.ne.s32.totalorder %s28, %s30
      %p37 = scmp.eq.s32.totalorder %s25, 1
      %p38 = por %p36, %p37
      %p39 = scmp.ne.s32.totalorder %s30, %s31
      %p40 = scmp.eq.s32.totalorder %s25, 0
      %p41 = por %p39, %p40
      %p42 = scmp.ne.s32.totalorder %s30, %s31
      %p43 = scmp.eq.s32.totalorder %s26, 1
      %p44 = por %p42, %p43
      %p46 = scmp.ne.s32.totalorder %s31, %s45
      %p47 = scmp.eq.s32.totalorder %s26, 0
      %p48 = por %p46, %p47
      %s49 = ssub.s32 %s20, %s27
      %p50 = scmp.eq.s32.totalorder %s49, 0
      %s52 = sadd.s32 %s51, 1
      %s53 = scalar_select %p50, %s51, %s52
      %p56 = pneg %p50
      %p57 = scmp.eq.s32.totalorder %s20, 1
      %p58 = por %p56, %p57
      %p59 = scmp.ne.s32.totalorder %s51, %s54
      %p60 = scmp.eq.s32.totalorder %s20, 0
      %p61 = por %p59, %p60
      %p62 = scmp.ne.s32.totalorder %s51, %s54
      %p63 = scmp.eq.s32.totalorder %s25, 1
      %p64 = por %p62, %p63
      %p65 = scmp.ne.s32.totalorder %s54, %s55
      %p66 = scmp.eq.s32.totalorder %s25, 0
      %p67 = por %p65, %p66
      %p68 = scmp.ne.s32.totalorder %s54, %s55
      %p69 = scmp.eq.s32.totalorder %s26, 1
      %p70 = por %p68, %p69
      %p72 = scmp.ne.s32.totalorder %s55, %s71
      %p73 = scmp.eq.s32.totalorder %s26, 0
      %p74 = por %p72, %p73
      %p75 = scmp.le.s32.totalorder 1, %s20
      %p76 = scmp.lt.s32.totalorder %s20, 3
      %p77 = pnand %p75, %p76
      %p78 = pneg %p77
      // Predicated region
      $region9: #{tpu_custom_call.1} parent=5 // pred_check
        _
      $region10: #{tpu_custom_call.1} parent=5 // pred_check_branch
        %80 = sbr.rel (%p77) target = $region12
      $region11: #{tpu_custom_call.1} parent=5 // pred_region
        %s81 = ssub.s32 %s20, 1
        // Predicated region
        $region13: #{tpu_custom_call.1} parent=11 // pred_check
          %p82 = pneg %p41
        $region14: #{tpu_custom_call.1} parent=11 // pred_check_branch
          %84 = sbr.rel (%p82) target = $region16
        $region15: #{tpu_custom_call.1} parent=11 // pred_region
          %86 = vsyncadd [#allocation7], 0
          %s87 = sshll.u32 %s1, 4
          %s88 = int_to_ptr.hbm [resolvable:$true] %s87
          %s89 = sshll.u32 [#allocation6], 4
          %s90 = int_to_ptr.vmem [resolvable:$true] %s89
          %95 = dma.hbm_to_vmem [thread:$0]  %s88, 4096, %s90, [#allocation7], 128, 128, 8
        $region16: #{tpu_custom_call.1} parent=11 // pred_fallthru
          _
      $region12: #{tpu_custom_call.1} parent=5 // pred_fallthru
        _
      %p96 = scmp.lt.s32.totalorder %s20, 2
      // Predicated region
      $region17: #{tpu_custom_call.1} parent=5 // pred_check
        %p97 = pneg %p96
      $region18: #{tpu_custom_call.1} parent=5 // pred_check_branch
        %99 = sbr.rel (%p97) target = $region20
      $region19: #{tpu_custom_call.1} parent=5 // pred_region
        _
      $region20: #{tpu_custom_call.1} parent=5 // pred_fallthru
        _
      %p100 = scmp.le.s32.totalorder 1, %s20
      %p101 = scmp.lt.s32.totalorder %s20, 3
      %p102 = pnand %p100, %p101
      %p103 = pneg %p102
      // Predicated region
      $region21: #{tpu_custom_call.1} parent=5 // pred_check
        _
      $region22: #{tpu_custom_call.1} parent=5 // pred_check_branch
        %105 = sbr.rel (%p102) target = $region24
      $region23: #{tpu_custom_call.1} parent=5 // pred_region
        %s106 = ssub.s32 %s20, 1
        // Predicated region
        $region25: #{tpu_custom_call.1} parent=23 // pred_check
          %p107 = pneg %p41
        $region26: #{tpu_custom_call.1} parent=23 // pred_check_branch
          %109 = sbr.rel (%p107) target = $region28
        $region27: #{tpu_custom_call.1} parent=23 // pred_region
          %111 = dma.done [#allocation7], 4096
        $region28: #{tpu_custom_call.1} parent=23 // pred_fallthru
          _
        %p112 = pneg %p41
        %p113 = pneg %p38
        %p114 = pneg %p67
        %p115 = pneg %p64
        %s116 = sand.u32 %s54, 1
        %s117 = scalar_lea.sflag [#allocation8], %s116
        %s118 = sand.u32 %s54, 1
        %s119 = smul.addr %s118, 8
        %s120 = scalar_lea.vmem [#allocation9], %s119
        %s121 = sand.u32 %s25, 1
        %p122 = scmp.eq.s32.totalorder %s25, 0
        // Predicated region
        $region29: #{tpu_custom_call.1} parent=23 // pred_check
          %p123 = pneg %p122
        $region30: #{tpu_custom_call.1} parent=23 // pred_check_branch
          %125 = sbr.rel (%p123) target = $region32
        $region31: #{tpu_custom_call.1} parent=23 // pred_region
          loop: start=0, step=1, limit=8
          $region33: #{tpu_custom_call.1} parent=31 // loop_pre_header
            _
          $region34: #{tpu_custom_call.1} parent=31 // loop_header
            %s127 = sphi 0, %s131
            %p128 = scmp.ge.s32.totalorder %s127, 8
          $region35: #{tpu_custom_call.1} parent=31 // loop_header_branch
            %130 = sbr.rel (%p128) target = $region39
          $region36: #{tpu_custom_call.1} parent=31 // loop_body
            %s132 = sld [smem:[#allocation5 + %s127]]
            %s133 = scalar_lea.vmem [#allocation6], %s132
            %s134 = scalar_lea.vmem [#allocation2], %s127
            // Predicated region
            $region40: #{tpu_custom_call.1} parent=36 // pred_check
              _
            $region41: #{tpu_custom_call.1} parent=36 // pred_check_branch
              %136 = sbr.rel target = $region43
            $region42: #{tpu_custom_call.1} parent=36 // pred_region
              // Predicated region
              $region55: #{tpu_custom_call.1} parent=42 // pred_check
                _
              $region56: #{tpu_custom_call.1} parent=42 // pred_check_branch
                %152 = sbr.rel (0) target = $region58
              $region57: #{tpu_custom_call.1} parent=42 // pred_region
                %s154 = ssub.s32 2, 1
                loop: start=0, step=1, limit=1
                $region59: #{tpu_custom_call.1} parent=57 // loop_pre_header
                  _
                $region60: #{tpu_custom_call.1} parent=57 // loop_header
                  %s156 = sphi 0, %s160
                  %p157 = scmp.ge.s32.totalorder %s156, 1
                  %s161 = sphi %s133, %s133
                  %s162 = sphi %s134, %s134
                $region61: #{tpu_custom_call.1} parent=57 // loop_header_branch
                  %159 = sbr.rel (%p157) target = $region65
                $region62: #{tpu_custom_call.1} parent=57 // loop_body
                  %v163 = vld [vmem:[%s161] sm:%s154]
                  %164 = vst [vmem:[%s162] sm:%s154] %v163
                $region63: #{tpu_custom_call.1} parent=57 // loop_footer
                  %s160 = sadd.s32 1, %s156
                $region64: #{tpu_custom_call.1} parent=57 // loop_footer_branch
                  %155 = sbr.rel target = $region60
                $region65: #{tpu_custom_call.1} parent=57 // loop_exit
                  _
              $region58: #{tpu_custom_call.1} parent=42 // pred_fallthru
                _
            $region43: #{tpu_custom_call.1} parent=36 // pred_fallthru
              _
            // Predicated region
            $region44: #{tpu_custom_call.1} parent=36 // pred_check
              _
            $region45: #{tpu_custom_call.1} parent=36 // pred_check_branch
              %138 = sbr.rel (0) target = $region47
            $region46: #{tpu_custom_call.1} parent=36 // pred_region
              %s140 = ssub.s32 2, 1
              loop: start=0, step=1, limit=1
              $region48: #{tpu_custom_call.1} parent=46 // loop_pre_header
                _
              $region49: #{tpu_custom_call.1} parent=46 // loop_header
                %s142 = sphi 0, %s146
                %p143 = scmp.ge.s32.totalorder %s142, 1
                %s147 = sphi %s133, %s133
                %s148 = sphi %s134, %s134
              $region50: #{tpu_custom_call.1} parent=46 // loop_header_branch
                %145 = sbr.rel (%p143) target = $region54
              $region51: #{tpu_custom_call.1} parent=46 // loop_body
                %v149 = vld [vmem:[%s147] sm:%s140]
                %150 = vst [vmem:[%s148] sm:%s140] %v149
              $region52: #{tpu_custom_call.1} parent=46 // loop_footer
                %s146 = sadd.s32 1, %s142
              $region53: #{tpu_custom_call.1} parent=46 // loop_footer_branch
                %141 = sbr.rel target = $region49
              $region54: #{tpu_custom_call.1} parent=46 // loop_exit
                _
            $region47: #{tpu_custom_call.1} parent=36 // pred_fallthru
              _
            // Predicated region
            $region66: #{tpu_custom_call.1} parent=36 // pred_check
              _
            $region67: #{tpu_custom_call.1} parent=36 // pred_check_branch
              %167 = sbr.rel (0) target = $region69
            $region68: #{tpu_custom_call.1} parent=36 // pred_region
              %168 = vsyncadd [#allocation3], 16
            $region69: #{tpu_custom_call.1} parent=36 // pred_fallthru
              _
          $region37: #{tpu_custom_call.1} parent=31 // loop_footer
            %s131 = sadd.s32 1, %s127
          $region38: #{tpu_custom_call.1} parent=31 // loop_footer_branch
            %126 = sbr.rel target = $region34
          $region39: #{tpu_custom_call.1} parent=31 // loop_exit
            _
        $region32: #{tpu_custom_call.1} parent=23 // pred_fallthru
          _
        %s169 = sadd.s32 %s25, 1
        %p170 = scmp.lt.s32.totalorder %s169, 2
        // Predicated region
        $region70: #{tpu_custom_call.1} parent=23 // pred_check
          %p171 = pneg %p170
        $region71: #{tpu_custom_call.1} parent=23 // pred_check_branch
          %173 = sbr.rel (%p171) target = $region73
        $region72: #{tpu_custom_call.1} parent=23 // pred_region
          %s174 = sand.u32 %s169, 1
          %s175 = smul.u32 %s169, 8
          loop: start=0, step=1, limit=8
          $region74: #{tpu_custom_call.1} parent=72 // loop_pre_header
            _
          $region75: #{tpu_custom_call.1} parent=72 // loop_header
            %s177 = sphi 0, %s181
            %p178 = scmp.ge.s32.totalorder %s177, 8
          $region76: #{tpu_custom_call.1} parent=72 // loop_header_branch
            %180 = sbr.rel (%p178) target = $region80
          $region77: #{tpu_custom_call.1} parent=72 // loop_body
            %s182 = sadd.s32 %s175, %s177
            %s183 = sld [smem:[#allocation5 + %s182]]
            %s184 = scalar_lea.vmem [#allocation6], %s183
            %s185 = smul.u32 %s174, 8
            %s186 = sadd.s32 %s177, %s185
            %s187 = scalar_lea.vmem [#allocation2], %s186
            %s188 = scalar_lea.sflag [#allocation3], %s174
            // Predicated region
            $region81: #{tpu_custom_call.1} parent=77 // pred_check
              _
            $region82: #{tpu_custom_call.1} parent=77 // pred_check_branch
              %190 = sbr.rel target = $region84
            $region83: #{tpu_custom_call.1} parent=77 // pred_region
              // Predicated region
              $region96: #{tpu_custom_call.1} parent=83 // pred_check
                _
              $region97: #{tpu_custom_call.1} parent=83 // pred_check_branch
                %206 = sbr.rel (0) target = $region99
              $region98: #{tpu_custom_call.1} parent=83 // pred_region
                %s208 = ssub.s32 2, 1
                loop: start=0, step=1, limit=1
                $region100: #{tpu_custom_call.1} parent=98 // loop_pre_header
                  _
                $region101: #{tpu_custom_call.1} parent=98 // loop_header
                  %s210 = sphi 0, %s214
                  %p211 = scmp.ge.s32.totalorder %s210, 1
                  %s215 = sphi %s184, %s184
                  %s216 = sphi %s187, %s187
                $region102: #{tpu_custom_call.1} parent=98 // loop_header_branch
                  %213 = sbr.rel (%p211) target = $region106
                $region103: #{tpu_custom_call.1} parent=98 // loop_body
                  %v217 = vld [vmem:[%s215] sm:%s208]
                  %218 = vst [vmem:[%s216] sm:%s208] %v217
                $region104: #{tpu_custom_call.1} parent=98 // loop_footer
                  %s214 = sadd.s32 1, %s210
                $region105: #{tpu_custom_call.1} parent=98 // loop_footer_branch
                  %209 = sbr.rel target = $region101
                $region106: #{tpu_custom_call.1} parent=98 // loop_exit
                  _
              $region99: #{tpu_custom_call.1} parent=83 // pred_fallthru
                _
            $region84: #{tpu_custom_call.1} parent=77 // pred_fallthru
              _
            // Predicated region
            $region85: #{tpu_custom_call.1} parent=77 // pred_check
              _
            $region86: #{tpu_custom_call.1} parent=77 // pred_check_branch
              %192 = sbr.rel (0) target = $region88
            $region87: #{tpu_custom_call.1} parent=77 // pred_region
              %s194 = ssub.s32 2, 1
              loop: start=0, step=1, limit=1
              $region89: #{tpu_custom_call.1} parent=87 // loop_pre_header
                _
              $region90: #{tpu_custom_call.1} parent=87 // loop_header
                %s196 = sphi 0, %s200
                %p197 = scmp.ge.s32.totalorder %s196, 1
                %s201 = sphi %s184, %s184
                %s202 = sphi %s187, %s187
              $region91: #{tpu_custom_call.1} parent=87 // loop_header_branch
                %199 = sbr.rel (%p197) target = $region95
              $region92: #{tpu_custom_call.1} parent=87 // loop_body
                %v203 = vld [vmem:[%s201] sm:%s194]
                %204 = vst [vmem:[%s202] sm:%s194] %v203
              $region93: #{tpu_custom_call.1} parent=87 // loop_footer
                %s200 = sadd.s32 1, %s196
              $region94: #{tpu_custom_call.1} parent=87 // loop_footer_branch
                %195 = sbr.rel target = $region90
              $region95: #{tpu_custom_call.1} parent=87 // loop_exit
                _
            $region88: #{tpu_custom_call.1} parent=77 // pred_fallthru
              _
            // Predicated region
            $region107: #{tpu_custom_call.1} parent=77 // pred_check
              _
            $region108: #{tpu_custom_call.1} parent=77 // pred_check_branch
              %221 = sbr.rel (0) target = $region110
            $region109: #{tpu_custom_call.1} parent=77 // pred_region
              %222 = vsyncadd %s188, 16
            $region110: #{tpu_custom_call.1} parent=77 // pred_fallthru
              _
          $region78: #{tpu_custom_call.1} parent=72 // loop_footer
            %s181 = sadd.s32 1, %s177
          $region79: #{tpu_custom_call.1} parent=72 // loop_footer_branch
            %176 = sbr.rel target = $region75
          $region80: #{tpu_custom_call.1} parent=72 // loop_exit
            _
        $region73: #{tpu_custom_call.1} parent=23 // pred_fallthru
          _
        %s223 = smul.u32 %s121, 8
        %s224 = scalar_lea.vmem [#allocation2], %s223
        %s225 = scalar_lea.sflag [#allocation3], %s121
        %s226 = smul.u32 8, 1
        %s227 = sshll.u32 %s226, 4
        %228 = dma.done %s225, %s227
        %v229 = vld [vmem:[%s224] sm:$0xff]
        %v230 = vmul.f32 %v229, 11.313708
        %231 = vst [vmem:[%s120] sm:$0xff] %v230
        %s232 = sand.u32 %s54, 1
        %s233 = scalar_lea.sflag [#allocation8], %s232
        %s234 = sand.u32 %s54, 1
        %s235 = smul.addr %s234, 8
        %s236 = scalar_lea.vmem [#allocation9], %s235
        // Predicated region
        $region111: #{tpu_custom_call.1} parent=23 // pred_check
          %p237 = pneg %p64
        $region112: #{tpu_custom_call.1} parent=23 // pred_check_branch
          %239 = sbr.rel (%p237) target = $region114
        $region113: #{tpu_custom_call.1} parent=23 // pred_region
          %241 = vsyncadd %s233, 0
          %s242 = smul.addr %s25, 8
          %s243 = scalar_lea.hbm %s2, %s242
          %s245 = sshll.u32 %s236, 4
          %s246 = int_to_ptr.vmem [resolvable:$true] %s245
          %s247 = sshll.u32 %s243, 4
          %s248 = int_to_ptr.hbm [resolvable:$true] %s247
          %250 = dma.vmem_to_hbm [thread:$0]  %s246, 128, %s248, %s233
        $region114: #{tpu_custom_call.1} parent=23 // pred_fallthru
          _
      $region24: #{tpu_custom_call.1} parent=5 // pred_fallthru
        _
      %p251 = scmp.le.s32.totalorder 2, %s20
      // Predicated region
      $region115: #{tpu_custom_call.1} parent=5 // pred_check
        %p252 = pneg %p251
      $region116: #{tpu_custom_call.1} parent=5 // pred_check_branch
        %254 = sbr.rel (%p252) target = $region118
      $region117: #{tpu_custom_call.1} parent=5 // pred_region
        %s255 = ssub.s32 %s20, 2
        // Predicated region
        $region119: #{tpu_custom_call.1} parent=117 // pred_check
          %p256 = pneg %p70
        $region120: #{tpu_custom_call.1} parent=117 // pred_check_branch
          %258 = sbr.rel (%p256) target = $region122
        $region121: #{tpu_custom_call.1} parent=117 // pred_region
          %s259 = sand.u32 %s55, 1
          %s260 = scalar_lea.sflag [#allocation8], %s259
          %s261 = sand.u32 %s55, 1
          %s262 = smul.addr %s261, 8
          %s263 = scalar_lea.vmem [#allocation9], %s262
          %265 = dma.done %s260, 128
        $region122: #{tpu_custom_call.1} parent=117 // pred_fallthru
          _
      $region118: #{tpu_custom_call.1} parent=5 // pred_fallthru
        _
    $region6: #{tpu_custom_call.1} parent=1 // loop_footer
      %s24 = sadd.s32 1, %s20
    $region7: #{tpu_custom_call.1} parent=1 // loop_footer_branch
      %19 = sbr.rel target = $region3
    $region8: #{tpu_custom_call.1} parent=1 // loop_exit
      _
    %266 = vsyncpa [#allocation7], 1
    %s267 = scalar_lea.sflag [#allocation7], 1
    %268 = vsyncpa %s267, 1
    %269 = vsyncpa [#allocation8], 1
    %s270 = scalar_lea.sflag [#allocation8], 1
    %271 = vsyncpa %s270, 1
  %272 = vsyncmov [#allocation3]
  %s273 = vpop.sfrf %272
  %p274 = scmp.eq.s32.totalorder %s273, 0
  %p275 = pneg %p274
  %277 = shalt.err (%p275)
  %s278 = scalar_lea.sflag [#allocation3], 1
  %279 = vsyncmov %s278
  %s280 = vpop.sfrf %279
  %p281 = scmp.eq.s32.totalorder %s280, 0
  %p282 = pneg %p281
  %284 = shalt.err (%p282)

</llo_original>
